<compile_context>
chip_gen: v7x
topology: tpu7x:2x2x1
jax: 0.10.0
libtpu: 0.0.40
codegen_flags: <defaults>
</compile_context>

<pallas_src>
import functools
import math

import jax
import jax.numpy as jnp
from jax.experimental import pallas as pl
from jax.experimental.pallas import tpu as pltpu

LANE = 128


def _round_up(x, m):
    return ((x + m - 1) // m) * m


def _pick_tile(n_pad, target):
    """Largest multiple of LANE that divides n_pad and is <= target (min LANE)."""
    d = n_pad // LANE
    best = 1
    for m in range(1, d + 1):
        if d % m == 0 and LANE * m <= target:
            best = m
    return LANE * best


def _vmem_budget_bytes():
    """~75% of physical VMEM (query per generation; fallback 64 MiB = v7x)."""
    cap = 64 * 1024 * 1024
    try:
        info = pltpu.get_tpu_info()
        cap = int(getattr(info, "vmem_capacity_bytes", cap))
    except Exception:
        pass
    return (cap // 4) * 3


# -----------------------------------------------------------------------------
# Kernel 1: feature transform  H = (d^{-1/2} * X) @ W    (hoisted out of A loop)
# -----------------------------------------------------------------------------
def feature_transform_kernel(x_ref, dinv_ref, w_ref, o_ref):
    xs = x_ref[...].astype(jnp.float32) * dinv_ref[...]          # f32 row scaling (exact)
    o_ref[...] = jnp.dot(
        xs.astype(jnp.bfloat16), w_ref[...], preferred_element_type=jnp.float32
    ).astype(o_ref.dtype)


def feature_transform(x_any, dinv, w_bf16, *, tm, vmem_budget):
    n_pad, c_in_p = x_any.shape
    c_out_p = w_bf16.shape[1]
    return pl.pallas_call(
        feature_transform_kernel,
        out_shape=jax.ShapeDtypeStruct((n_pad, c_out_p), jnp.bfloat16),
        grid_spec=pltpu.PrefetchScalarGridSpec(
            num_scalar_prefetch=0,
            grid=(n_pad // tm,),
            in_specs=[
                pl.BlockSpec((tm, c_in_p), lambda i: (i, 0)),     # X rows
                pl.BlockSpec((tm, 1), lambda i: (i, 0)),          # d^{-1/2} rows
                pl.BlockSpec((c_in_p, c_out_p), lambda i: (0, 0)),  # W (whole, resident)
            ],
            out_specs=pl.BlockSpec((tm, c_out_p), lambda i: (i, 0)),
        ),
        compiler_params=pltpu.CompilerParams(
            dimension_semantics=("parallel",),
            vmem_limit_bytes=vmem_budget,
        ),
    )(x_any, dinv, w_bf16)


# -----------------------------------------------------------------------------
# Kernel 2: aggregation  O = act( d^{-1/2} * ((A+I) @ H) + b )
# -----------------------------------------------------------------------------
def gcn_aggregate_kernel(a_ref, h_ref, dinv_ref, b_ref, o_ref, *scratch,
                         apply_relu, h_resident, tk):
    k = pl.program_id(1)
    # Final (f32) layer accumulates directly into the resident output block;
    # the bf16 hidden layer uses an f32 VMEM scratch accumulator.
    acc_ref = scratch[0] if scratch else o_ref

    @pl.when(k == 0)
    def _init():
        acc_ref[...] = jnp.zeros_like(acc_ref)

    if h_resident:
        start = pl.multiple_of(k * tk, tk)
        h_tile = h_ref[pl.ds(start, tk), :]      # slice the VMEM-resident H
    else:
        h_tile = h_ref[...]                      # streamed (tk, C) tile

    acc_ref[...] += jnp.dot(a_ref[...], h_tile, preferred_element_type=jnp.float32)

    @pl.when(k == pl.num_programs(1) - 1)
    def _epilogue():
        out = acc_ref[...] * dinv_ref[...] + b_ref[...]
        if apply_relu:
            out = jnp.maximum(out, 0.0)
        o_ref[...] = out.astype(o_ref.dtype)


def gcn_aggregate(a_bf16, h_bf16, dinv, b_f32, *, apply_relu, out_dtype,
                  tm, tk, h_resident, vmem_budget):
    n_pad = a_bf16.shape[0]
    c_p = h_bf16.shape[1]
    grid = (n_pad // tm, n_pad // tk)

    if h_resident:
        h_spec = pl.BlockSpec((n_pad, c_p), lambda i, k: (0, 0))   # DMA'd once, resident
    else:
        h_spec = pl.BlockSpec((tk, c_p), lambda i, k: (k, 0))      # streamed per k

    needs_acc_scratch = jnp.dtype(out_dtype) != jnp.dtype(jnp.float32)
    scratch_shapes = [pltpu.VMEM((tm, c_p), jnp.float32)] if needs_acc_scratch else []

    kernel = functools.partial(
        gcn_aggregate_kernel, apply_relu=apply_relu, h_resident=h_resident, tk=tk
    )

    return pl.pallas_call(
        kernel,
        out_shape=jax.ShapeDtypeStruct((n_pad, c_p), out_dtype),
        grid_spec=pltpu.PrefetchScalarGridSpec(
            num_scalar_prefetch=0,
            grid=grid,
            in_specs=[
                pl.BlockSpec((tm, tk), lambda i, k: (i, k)),   # A tile (0/1, exact)
                h_spec,                                        # H (resident or streamed)
                pl.BlockSpec((tm, 1), lambda i, k: (i, 0)),    # d^{-1/2} rows
                pl.BlockSpec((1, c_p), lambda i, k: (0, 0)),   # bias (whole)
            ],
            out_specs=pl.BlockSpec((tm, c_p), lambda i, k: (i, 0)),
            scratch_shapes=scratch_shapes,
        ),
        compiler_params=pltpu.CompilerParams(
            dimension_semantics=("parallel", "arbitrary"),
            vmem_limit_bytes=vmem_budget,
        ),
    )(a_bf16, h_bf16, dinv, b_f32)


# -----------------------------------------------------------------------------
# Glue
# -----------------------------------------------------------------------------
def build_adjacency_and_dinv(edge_index, num_nodes):
    """Exact (A + I) with 0/1 entries and d^{-1/2} (PyG gcn_norm degrees)."""
    src, dst = edge_index[0], edge_index[1]
    adj = jnp.zeros((num_nodes, num_nodes), dtype=jnp.float32)
    # message flows source -> target: A[target, source] = 1
    # NOTE: duplicate edges are deduplicated here (multigraphs would diverge from PyG).
    adj = adj.at[dst, src].set(1.0)
    adj_hat = adj + jnp.eye(num_nodes, dtype=jnp.float32)       # add self loops
    deg = adj_hat.sum(axis=1)
    d_inv_sqrt = jnp.where(deg > 0, 1.0 / jnp.sqrt(deg), 0.0)
    return adj_hat, d_inv_sqrt


def gnn_model_forward(x, edge_index, params, *, tm_target=1024, tk_target=2048):
    """2-layer GCN forward with hoisted feature transforms + tiled A aggregation."""
    n, c_in = x.shape
    w1, b1, w2, b2 = params["w1"], params["b1"], params["w2"], params["b2"]
    c_hidden, c_out = w1.shape[0], w2.shape[0]

    vmem_budget = _vmem_budget_bytes()

    n_pad = _round_up(n, LANE)
    c_in_p = _round_up(c_in, LANE)
    c_hid_p = _round_up(c_hidden, LANE)
    c_out_p = _round_up(c_out, LANE)
    c_max_p = max(c_hid_p, c_out_p)

    # --- aggregation tile plan: biggest A tile that fits; keep >=2 row blocks if possible
    tm_cap = tm_target
    if n_pad >= 2 * LANE:
        tm_cap = min(tm_cap, n_pad // 2)
    tm_ = _pick_tile(n_pad, tm_cap)
    tk_ = _pick_tile(n_pad, tk_target)
    while 2 * tm_ * tk_ * 2 > vmem_budget // 4 and tk_ > LANE:      # double-buffered A
        tk_ = _pick_tile(n_pad, tk_ // 2)
    while 2 * tm_ * tk_ * 2 > vmem_budget // 4 and tm_ > LANE:
        tm_ = _pick_tile(n_pad, tm_ // 2)

    # H residency decision (conservatively assume Pallas double-buffers the constant block)
    resident_cost = 2 * n_pad * c_max_p * 2
    other_cost = 2 * tm_ * tk_ * 2 + 3 * tm_ * c_max_p * 4 + (2 << 20)
    h_resident = resident_cost + other_cost <= vmem_budget

    # --- feature-transform tile plan
    tm_f = _pick_tile(n_pad, tm_target)
    while (2 * tm_f * (max(c_in_p, c_hid_p) + c_max_p) * 2 > vmem_budget // 2
           and tm_f > LANE):
        tm_f = _pick_tile(n_pad, tm_f // 2)

    # --- build/pad operands: exact 0/1 adjacency in bf16, degree scaling in f32
    adj_hat, d_inv_sqrt = build_adjacency_and_dinv(edge_index, n)
    a_p = (jnp.zeros((n_pad, n_pad), jnp.bfloat16)
           .at[:n, :n].set(adj_hat.astype(jnp.bfloat16)))
    dinv_p = jnp.zeros((n_pad, 1), jnp.float32).at[:n, 0].set(d_inv_sqrt)
    x_p = jnp.zeros((n_pad, c_in_p), jnp.bfloat16).at[:n, :c_in].set(x.astype(jnp.bfloat16))
    w1_p = (jnp.zeros((c_in_p, c_hid_p), jnp.bfloat16)
            .at[:c_in, :c_hidden].set(w1.T.astype(jnp.bfloat16)))
    b1_p = jnp.zeros((1, c_hid_p), jnp.float32).at[0, :c_hidden].set(b1)
    w2_p = (jnp.zeros((c_hid_p, c_out_p), jnp.bfloat16)
            .at[:c_hidden, :c_out].set(w2.T.astype(jnp.bfloat16)))
    b2_p = jnp.zeros((1, c_out_p), jnp.float32).at[0, :c_out].set(b2)

    # layer 1: GCNConv + ReLU (Dropout = identity in eval mode)
    h1 = feature_transform(x_p, dinv_p, w1_p, tm=tm_f, vmem_budget=vmem_budget)
    h1 = gcn_aggregate(a_p, h1, dinv_p, b1_p, apply_relu=True, out_dtype=jnp.bfloat16,
                       tm=tm_, tk=tk_, h_resident=h_resident, vmem_budget=vmem_budget)
    # layer 2: GCNConv, f32 output (accumulates directly into the output block)
    h2 = feature_transform(h1, dinv_p, w2_p, tm=tm_f, vmem_budget=vmem_budget)
    out_p = gcn_aggregate(a_p, h2, dinv_p, b2_p, apply_relu=False, out_dtype=jnp.float32,
                          tm=tm_, tk=tk_, h_resident=h_resident, vmem_budget=vmem_budget)

    return out_p[:n, :c_out]


def init_params(key, c_in, c_hidden, c_out):
    """Deterministic glorot-style init (GCNConv: glorot weight, zero bias)."""
    k1, k2 = jax.random.split(key)

    def glorot(k, out_c, in_c):
        limit = jnp.sqrt(6.0 / (in_c + out_c))
        return jax.random.uniform(k, (out_c, in_c), jnp.float32, -limit, limit)

    return {
        "w1": glorot(k1, c_hidden, c_in),
        "b1": jnp.zeros((c_hidden,), jnp.float32),
        "w2": glorot(k2, c_out, c_hidden),
        "b2": jnp.zeros((c_out,), jnp.float32),
    }


def reference_forward(x, edge_index, params):
    """Pure-JAX f32 reference of the same forward pass (sanity check)."""
    adj_hat, d_inv_sqrt = build_adjacency_and_dinv(edge_index, x.shape[0])
    a_norm = d_inv_sqrt[:, None] * adj_hat * d_inv_sqrt[None, :]
    h = a_norm @ (x @ params["w1"].T) + params["b1"]
    h = jnp.maximum(h, 0.0)
    return a_norm @ (h @ params["w2"].T) + params["b2"]


if __name__ == "__main__":
    key = jax.random.PRNGKey(0)
    k_x, k_p = jax.random.split(key)

    # small synthetic graph: N=8 nodes, c_in=4, c_hidden=32, c_out=4
    N, C_IN, C_HID, C_OUT = 8, 4, 32, 4
    x = jax.random.normal(k_x, (N, C_IN), dtype=jnp.float32)

    # undirected ring + a couple of chords (both directions listed, no duplicates)
    src = jnp.array([0, 1, 1, 2, 2, 3, 3, 4, 4, 5, 5, 6, 6, 7, 7, 0, 0, 4, 2, 6],
                    dtype=jnp.int32)
    dst = jnp.array([1, 0, 2, 1, 3, 2, 4, 3, 5, 4, 6, 5, 7, 6, 0, 7, 4, 0, 6, 2],
                    dtype=jnp.int32)
    edge_index = jnp.stack([src, dst], axis=0)  # [2, E]

    params = init_params(k_p, C_IN, C_HID, C_OUT)

    out = gnn_model_forward(x, edge_index, params)
    out = jax.block_until_ready(out)

    ref = reference_forward(x, edge_index, params)
    assert out.shape == (N, C_OUT)
    # bf16 X/H/W with exact 0/1 adjacency + f32 degree scaling and f32 accumulation.
    assert jnp.allclose(out, ref, atol=5e-2, rtol=5e-2)

    print("KERNEL_OK")
</pallas_src>

<mosaic_0001>
module attributes {stable_mosaic.version = 11 : i64} {
  func.func @feature_transform_kernel(%arg0: i32, %arg1: memref<128x128xbf16, #tpu.memory_space<vmem>>, %arg2: memref<128x1xf32, #tpu.memory_space<vmem>>, %arg3: memref<128x128xbf16, #tpu.memory_space<vmem>>, %arg4: memref<128x128xbf16, #tpu.memory_space<vmem>>) attributes {dimension_semantics = [#tpu.dimension_semantics<parallel>], iteration_bounds = array<i64: 1>, scalar_prefetch = 0 : i64, scratch_operands = 0 : i64, tpu.core_type = #tpu.core_type<tc>, window_params = [{transform_indices = @transform_0, window_bounds = array<i64: 128, 128>}, {transform_indices = @transform_1, window_bounds = array<i64: 128, 1>}, {pipeline_mode = #tpu.pipeline_mode<synchronous>, transform_indices = @transform_2, window_bounds = array<i64: 128, 128>}, {transform_indices = @transform_3, window_bounds = array<i64: 128, 128>}]} {
    %c0 = arith.constant 0 : index
    %c0_0 = arith.constant 0 : index
    %0 = vector.load %arg1[%c0, %c0_0] : memref<128x128xbf16, #tpu.memory_space<vmem>>, vector<128x128xbf16>
    %1 = arith.extf %0 : vector<128x128xbf16> to vector<128x128xf32>
    %c0_1 = arith.constant 0 : index
    %c0_2 = arith.constant 0 : index
    %2 = vector.load %arg2[%c0_1, %c0_2] : memref<128x1xf32, #tpu.memory_space<vmem>>, vector<128x1xf32>
    %3 = vector.broadcast %2 : vector<128x1xf32> to vector<128x128xf32>
    %4 = arith.mulf %1, %3 : vector<128x128xf32>
    %5 = arith.truncf %4 : vector<128x128xf32> to vector<128x128xbf16>
    %c0_3 = arith.constant 0 : index
    %c0_4 = arith.constant 0 : index
    %6 = vector.load %arg3[%c0_3, %c0_4] : memref<128x128xbf16, #tpu.memory_space<vmem>>, vector<128x128xbf16>
    %cst = arith.constant dense<0.000000e+00> : vector<128x128xf32>
    %7 = tpu.matmul %5, %6, %cst {dimension_numbers = #tpu.dot_dimension_numbers<[1], [0], [0], [1], [0, 0, 1, 1], [], []>} : vector<128x128xbf16>, vector<128x128xbf16>, vector<128x128xf32> -> vector<128x128xf32>
    %8 = arith.truncf %7 : vector<128x128xf32> to vector<128x128xbf16>
    %c0_5 = arith.constant 0 : index
    %c0_6 = arith.constant 0 : index
    %9 = vector.load %arg4[%c0_5, %c0_6] : memref<128x128xbf16, #tpu.memory_space<vmem>>, vector<128x128xbf16>
    tpu.vector_store %arg4[%c0_5, %c0_6], %8 {strides = array<i32>} : memref<128x128xbf16, #tpu.memory_space<vmem>>, vector<128x128xbf16>,
    return
  }
  func.func @transform_0(%arg0: i32) -> (i32, i32) {
    %c0_i32 = arith.constant 0 : i32
    %c0_i32_0 = arith.constant 0 : i32
    return %arg0, %c0_i32 : i32, i32
  }
  func.func @transform_1(%arg0: i32) -> (i32, i32) {
    %c0_i32 = arith.constant 0 : i32
    %c0_i32_0 = arith.constant 0 : i32
    return %arg0, %c0_i32 : i32, i32
  }
  func.func @transform_2(%arg0: i32) -> (i32, i32) {
    %c0_i32 = arith.constant 0 : i32
    %c0_i32_0 = arith.constant 0 : i32
    %c0_i32_1 = arith.constant 0 : i32
    return %c0_i32, %c0_i32_0 : i32, i32
  }
  func.func @transform_3(%arg0: i32) -> (i32, i32) {
    %c0_i32 = arith.constant 0 : i32
    %c0_i32_0 = arith.constant 0 : i32
    return %arg0, %c0_i32 : i32, i32
  }
}

</mosaic_0001>

<llo_original>
// kernel: tpu_custom_call.1
$region0: #{tpu_custom_call.1}
  #allocation0 [shape = 'u32[]', space=smem, size = 0x4, offset = 0x4, fixed_abs, tag = 'smem constant byte address 0x4 - core index']
  #allocation1 [shape = 'u32[144,128]{1,0:T(1,128)}', space=vmem, size = 0x12000, scoped, tag = 'internal scratch']
  %s0 = inlined_call_operand.vmem [shape: bf16[128,128], index: 0, kind: input, shape index: {}]
  %s1 = inlined_call_operand.vmem [shape: f32[128,1], index: 1, kind: input, shape index: {}]
  %s2 = inlined_call_operand.vmem [shape: bf16[128,128], index: 2, kind: input, shape index: {}]
  %s3 = inlined_call_operand.hbm [shape: bf16[128,128], index: 3, kind: output, shape index: {}]
  %s4 = sld [smem:[#allocation0]]
  $region22: #{tpu_custom_call.1} parent=0
    _
  %s6 = ssub.s32 1, %s4
  %s7 = scalar_select 0, %s6, %s4
  $region1: #{tpu_custom_call.1} parent=0
    #allocation2 [shape = 'u8[32768]{0}', space=vmem, size = 0x8000, scoped, tag = 'output window, operand 0, single buffered']
    #allocation3 [shape = 's32[1]{0}', space=sflag, size = 0x4, scoped, tag = 'scoped memory for tpu_custom_call.1']
    %8 = vsyncpa [#allocation3], 0
    // Predicated region
    $region2: #{tpu_custom_call.1} parent=1 // pred_check
      _
    $region3: #{tpu_custom_call.1} parent=1 // pred_check_branch
      %10 = sbr.rel (0) target = $region5
    $region4: #{tpu_custom_call.1} parent=1 // pred_region
      _
    $region5: #{tpu_custom_call.1} parent=1 // pred_fallthru
      _
    // Predicated region
    $region6: #{tpu_custom_call.1} parent=1 // pred_check
      _
    $region7: #{tpu_custom_call.1} parent=1 // pred_check_branch
      %12 = sbr.rel (0) target = $region9
    $region8: #{tpu_custom_call.1} parent=1 // pred_region
      _
    $region9: #{tpu_custom_call.1} parent=1 // pred_fallthru
      _
    // Predicated region
    $region10: #{tpu_custom_call.1} parent=1 // pred_check
      _
    $region11: #{tpu_custom_call.1} parent=1 // pred_check_branch
      %14 = sbr.rel (0) target = $region13
    $region12: #{tpu_custom_call.1} parent=1 // pred_region
      _
    $region13: #{tpu_custom_call.1} parent=1 // pred_fallthru
      _
    %v16 = vld [vmem:[%s0] sm:$0xf]
    %v17 = vld [vmem:[%s0 + $0x4] sm:$0xf]
    %v18 = vld [vmem:[%s0 + $0x8] sm:$0xf]
    %v19 = vld [vmem:[%s0 + $0xc] sm:$0xf]
    %v20 = vld [vmem:[%s0 + $0x10] sm:$0xf]
    %v21 = vld [vmem:[%s0 + $0x14] sm:$0xf]
    %v22 = vld [vmem:[%s0 + $0x18] sm:$0xf]
    %v23 = vld [vmem:[%s0 + $0x1c] sm:$0xf]
    %v24 = vld [vmem:[%s0 + $0x20] sm:$0xf]
    %v25 = vld [vmem:[%s0 + $0x24] sm:$0xf]
    %v26 = vld [vmem:[%s0 + $0x28] sm:$0xf]
    %v27 = vld [vmem:[%s0 + $0x2c] sm:$0xf]
    %v28 = vld [vmem:[%s0 + $0x30] sm:$0xf]
    %v29 = vld [vmem:[%s0 + $0x34] sm:$0xf]
    %v30 = vld [vmem:[%s0 + $0x38] sm:$0xf]
    %v31 = vld [vmem:[%s0 + $0x3c] sm:$0xf]
    %v32 = vunpack.c.l.bf16 %v16
    %v33 = vunpack.c.l.bf16 %v17
    %v34 = vunpack.c.l.bf16 %v18
    %v35 = vunpack.c.l.bf16 %v19
    %v36 = vunpack.c.l.bf16 %v20
    %v37 = vunpack.c.l.bf16 %v21
    %v38 = vunpack.c.l.bf16 %v22
    %v39 = vunpack.c.l.bf16 %v23
    %v40 = vunpack.c.l.bf16 %v24
    %v41 = vunpack.c.l.bf16 %v25
    %v42 = vunpack.c.l.bf16 %v26
    %v43 = vunpack.c.l.bf16 %v27
    %v44 = vunpack.c.l.bf16 %v28
    %v45 = vunpack.c.l.bf16 %v29
    %v46 = vunpack.c.l.bf16 %v30
    %v47 = vunpack.c.l.bf16 %v31
    %v48 = vld [vmem:[%s1] sm:$0xff]
    %v49 = vld [vmem:[%s1 + $0x8] sm:$0xff]
    %v50 = vld [vmem:[%s1 + $0x10] sm:$0xff]
    %v51 = vld [vmem:[%s1 + $0x18] sm:$0xff]
    %v52 = vld [vmem:[%s1 + $0x20] sm:$0xff]
    %v53 = vld [vmem:[%s1 + $0x28] sm:$0xff]
    %v54 = vld [vmem:[%s1 + $0x30] sm:$0xff]
    %v55 = vld [vmem:[%s1 + $0x38] sm:$0xff]
    %v56 = vld [vmem:[%s1 + $0x40] sm:$0xff]
    %v57 = vld [vmem:[%s1 + $0x48] sm:$0xff]
    %v58 = vld [vmem:[%s1 + $0x50] sm:$0xff]
    %v59 = vld [vmem:[%s1 + $0x58] sm:$0xff]
    %v60 = vld [vmem:[%s1 + $0x60] sm:$0xff]
    %v61 = vld [vmem:[%s1 + $0x68] sm:$0xff]
    %v62 = vld [vmem:[%s1 + $0x70] sm:$0xff]
    %v63 = vld [vmem:[%s1 + $0x78] sm:$0xff]
    %65 = vset.pattern.permute.xlu0 0
    %66 = vperm.xlu0 %65, %v48
    %v67 = vpop.permute.xlu0 %66
    %70 = vset.pattern.permute.xlu0 0
    %71 = vperm.xlu0 %70, %v49
    %v72 = vpop.permute.xlu0 %71
    %75 = vset.pattern.permute.xlu0 0
    %76 = vperm.xlu0 %75, %v50
    %v77 = vpop.permute.xlu0 %76
    %80 = vset.pattern.permute.xlu0 0
    %81 = vperm.xlu0 %80, %v51
    %v82 = vpop.permute.xlu0 %81
    %85 = vset.pattern.permute.xlu0 0
    %86 = vperm.xlu0 %85, %v52
    %v87 = vpop.permute.xlu0 %86
    %90 = vset.pattern.permute.xlu0 0
    %91 = vperm.xlu0 %90, %v53
    %v92 = vpop.permute.xlu0 %91
    %95 = vset.pattern.permute.xlu0 0
    %96 = vperm.xlu0 %95, %v54
    %v97 = vpop.permute.xlu0 %96
    %100 = vset.pattern.permute.xlu0 0
    %101 = vperm.xlu0 %100, %v55
    %v102 = vpop.permute.xlu0 %101
    %105 = vset.pattern.permute.xlu0 0
    %106 = vperm.xlu0 %105, %v56
    %v107 = vpop.permute.xlu0 %106
    %110 = vset.pattern.permute.xlu0 0
    %111 = vperm.xlu0 %110, %v57
    %v112 = vpop.permute.xlu0 %111
    %115 = vset.pattern.permute.xlu0 0
    %116 = vperm.xlu0 %115, %v58
    %v117 = vpop.permute.xlu0 %116
    %120 = vset.pattern.permute.xlu0 0
    %121 = vperm.xlu0 %120, %v59
    %v122 = vpop.permute.xlu0 %121
    %125 = vset.pattern.permute.xlu0 0
    %126 = vperm.xlu0 %125, %v60
    %v127 = vpop.permute.xlu0 %126
    %130 = vset.pattern.permute.xlu0 0
    %131 = vperm.xlu0 %130, %v61
    %v132 = vpop.permute.xlu0 %131
    %135 = vset.pattern.permute.xlu0 0
    %136 = vperm.xlu0 %135, %v62
    %v137 = vpop.permute.xlu0 %136
    %140 = vset.pattern.permute.xlu0 0
    %141 = vperm.xlu0 %140, %v63
    %v142 = vpop.permute.xlu0 %141
    %v144 = vmul.f32 %v32, %v67
    %v145 = vmul.f32 %v33, %v72
    %v146 = vmul.f32 %v34, %v77
    %v147 = vmul.f32 %v35, %v82
    %v148 = vmul.f32 %v36, %v87
    %v149 = vmul.f32 %v37, %v92
    %v150 = vmul.f32 %v38, %v97
    %v151 = vmul.f32 %v39, %v102
    %v152 = vmul.f32 %v40, %v107
    %v153 = vmul.f32 %v41, %v112
    %v154 = vmul.f32 %v42, %v117
    %v155 = vmul.f32 %v43, %v122
    %v156 = vmul.f32 %v44, %v127
    %v157 = vmul.f32 %v45, %v132
    %v158 = vmul.f32 %v46, %v137
    %v159 = vmul.f32 %v47, %v142
    %v160 = vpack.c.bf16 %v145, %v144
    %v161 = vpack.c.bf16 %v147, %v146
    %v162 = vpack.c.bf16 %v149, %v148
    %v163 = vpack.c.bf16 %v151, %v150
    %v164 = vpack.c.bf16 %v153, %v152
    %v165 = vpack.c.bf16 %v155, %v154
    %v166 = vpack.c.bf16 %v157, %v156
    %v167 = vpack.c.bf16 %v159, %v158
    %v168 = vld [vmem:[%s2] sm:$0xf]
    %v169 = vld [vmem:[%s2 + $0x4] sm:$0xf]
    %v170 = vld [vmem:[%s2 + $0x8] sm:$0xf]
    %v171 = vld [vmem:[%s2 + $0xc] sm:$0xf]
    %v172 = vld [vmem:[%s2 + $0x10] sm:$0xf]
    %v173 = vld [vmem:[%s2 + $0x14] sm:$0xf]
    %v174 = vld [vmem:[%s2 + $0x18] sm:$0xf]
    %v175 = vld [vmem:[%s2 + $0x1c] sm:$0xf]
    %v176 = vld [vmem:[%s2 + $0x20] sm:$0xf]
    %v177 = vld [vmem:[%s2 + $0x24] sm:$0xf]
    %v178 = vld [vmem:[%s2 + $0x28] sm:$0xf]
    %v179 = vld [vmem:[%s2 + $0x2c] sm:$0xf]
    %v180 = vld [vmem:[%s2 + $0x30] sm:$0xf]
    %v181 = vld [vmem:[%s2 + $0x34] sm:$0xf]
    %v182 = vld [vmem:[%s2 + $0x38] sm:$0xf]
    %v183 = vld [vmem:[%s2 + $0x3c] sm:$0xf]
    %v200 = vunpack.c.l.b16 %v168
    %v201 = vunpack.c.l.b16 %v169
    %v202 = vunpack.c.l.b16 %v170
    %v203 = vunpack.c.l.b16 %v171
    %v204 = vunpack.c.l.b16 %v172
    %v205 = vunpack.c.l.b16 %v173
    %v206 = vunpack.c.l.b16 %v174
    %v207 = vunpack.c.l.b16 %v175
    %v208 = vunpack.c.l.b16 %v176
    %v209 = vunpack.c.l.b16 %v177
    %v210 = vunpack.c.l.b16 %v178
    %v211 = vunpack.c.l.b16 %v179
    %v212 = vunpack.c.l.b16 %v180
    %v213 = vunpack.c.l.b16 %v181
    %v214 = vunpack.c.l.b16 %v182
    %v215 = vunpack.c.l.b16 %v183
    %v216 = vpack.c.b16 %v201, %v200
    %v217 = vpack.c.b16 %v203, %v202
    %v218 = vpack.c.b16 %v205, %v204
    %v219 = vpack.c.b16 %v207, %v206
    %v220 = vpack.c.b16 %v209, %v208
    %v221 = vpack.c.b16 %v211, %v210
    %v222 = vpack.c.b16 %v213, %v212
    %v223 = vpack.c.b16 %v215, %v214
    %232 = vmatprep.subr.bf16.mxu0 0
    %233 = vmatpush1.bf16.msra.mxu0 %v216
    %234 = vmatprep.subr.bf16.mxu0 0
    %235 = vmatpush1.bf16.msra.mxu0 %v217
    %236 = vmatprep.subr.bf16.mxu0 0
    %237 = vmatpush1.bf16.msra.mxu0 %v218
    %238 = vmatprep.subr.bf16.mxu0 0
    %239 = vmatpush1.bf16.msra.mxu0 %v219
    %240 = vmatprep.subr.bf16.mxu0 0
    %241 = vmatpush1.bf16.msra.mxu0 %v220
    %242 = vmatprep.subr.bf16.mxu0 0
    %243 = vmatpush1.bf16.msra.mxu0 %v221
    %244 = vmatprep.subr.bf16.mxu0 0
    %245 = vmatpush1.bf16.msra.mxu0 %v222
    %246 = vmatprep.subr.bf16.mxu0 0
    %247 = vmatpush1.bf16.msra.mxu0 %v223
    %248 = vmatprep.subr.bf16.mxu0 0
    %249 = vmatpush1.bf16.msra.mxu0 0
    %250 = vmatprep.subr.bf16.mxu0 0
    %251 = vmatpush1.bf16.msra.mxu0 0
    %252 = vmatprep.subr.bf16.mxu0 0
    %253 = vmatpush1.bf16.msra.mxu0 0
    %254 = vmatprep.subr.bf16.mxu0 0
    %255 = vmatpush1.bf16.msra.mxu0 0
    %256 = vmatprep.subr.bf16.mxu0 0
    %257 = vmatpush1.bf16.msra.mxu0 0
    %258 = vmatprep.subr.bf16.mxu0 0
    %259 = vmatpush1.bf16.msra.mxu0 0
    %260 = vmatprep.subr.bf16.mxu0 0
    %261 = vmatpush1.bf16.msra.mxu0 0
    %262 = vmatprep.subr.bf16.mxu0 0
    %263 = vmatpush1.bf16.msra.mxu0 0
    %264 = vmatprep.mubr.bf16.mxu0 0
    %265 = vmatmul.mubr.bf16.gmra.mrb[0].mxu0 %v160
    %v266 = vpop.f32.mrb[0].mxu0
    %v267 = vadd.f32 0.0, %v266
    %v268 = vpop.f32.mrb[0].mxu0
    %v269 = vpop.f32.mrb[0].mxu0
    %v270 = vadd.f32 0.0, %v269
    %v271 = vpop.f32.mrb[0].mxu0
    %272 = vmatprep.mubr.bf16.mxu0 0
    %273 = vmatmul.mubr.bf16.gmra.mrb[0].mxu0 %v161
    %v274 = vpop.f32.mrb[0].mxu0
    %v275 = vadd.f32 0.0, %v274
    %v276 = vpop.f32.mrb[0].mxu0
    %v277 = vpop.f32.mrb[0].mxu0
    %v278 = vadd.f32 0.0, %v277
    %v279 = vpop.f32.mrb[0].mxu0
    %280 = vmatprep.mubr.bf16.mxu0 0
    %281 = vmatmul.mubr.bf16.gmra.mrb[0].mxu0 %v162
    %v282 = vpop.f32.mrb[0].mxu0
    %v283 = vadd.f32 0.0, %v282
    %v284 = vpop.f32.mrb[0].mxu0
    %v285 = vpop.f32.mrb[0].mxu0
    %v286 = vadd.f32 0.0, %v285
    %v287 = vpop.f32.mrb[0].mxu0
    %288 = vmatprep.mubr.bf16.mxu0 0
    %289 = vmatmul.mubr.bf16.gmra.mrb[0].mxu0 %v163
    %v290 = vpop.f32.mrb[0].mxu0
    %v291 = vadd.f32 0.0, %v290
    %v292 = vpop.f32.mrb[0].mxu0
    %v293 = vpop.f32.mrb[0].mxu0
    %v294 = vadd.f32 0.0, %v293
    %v295 = vpop.f32.mrb[0].mxu0
    %296 = vmatprep.mubr.bf16.mxu0 0
    %297 = vmatmul.mubr.bf16.gmra.mrb[0].mxu0 %v164
    %v298 = vpop.f32.mrb[0].mxu0
    %v299 = vadd.f32 0.0, %v298
    %v300 = vpop.f32.mrb[0].mxu0
    %v301 = vpop.f32.mrb[0].mxu0
    %v302 = vadd.f32 0.0, %v301
    %v303 = vpop.f32.mrb[0].mxu0
    %304 = vmatprep.mubr.bf16.mxu0 0
    %305 = vmatmul.mubr.bf16.gmra.mrb[0].mxu0 %v165
    %v306 = vpop.f32.mrb[0].mxu0
    %v307 = vadd.f32 0.0, %v306
    %v308 = vpop.f32.mrb[0].mxu0
    %v309 = vpop.f32.mrb[0].mxu0
    %v310 = vadd.f32 0.0, %v309
    %v311 = vpop.f32.mrb[0].mxu0
    %312 = vmatprep.mubr.bf16.mxu0 0
    %313 = vmatmul.mubr.bf16.gmra.mrb[0].mxu0 %v166
    %v314 = vpop.f32.mrb[0].mxu0
    %v315 = vadd.f32 0.0, %v314
    %v316 = vpop.f32.mrb[0].mxu0
    %v317 = vpop.f32.mrb[0].mxu0
    %v318 = vadd.f32 0.0, %v317
    %v319 = vpop.f32.mrb[0].mxu0
    %320 = vmatprep.mubr.bf16.mxu0 0
    %321 = vmatmul.mubr.bf16.gmra.mrb[0].mxu0 %v167
    %v322 = vpop.f32.mrb[0].mxu0
    %v323 = vadd.f32 0.0, %v322
    %v324 = vpop.f32.mrb[0].mxu0
    %v325 = vpop.f32.mrb[0].mxu0
    %v326 = vadd.f32 0.0, %v325
    %v327 = vpop.f32.mrb[0].mxu0
    %328 = vdwg.mxu0
    %v329 = vpack.c.bf16 %v270, %v267
    %v330 = vpack.c.bf16 %v278, %v275
    %v331 = vpack.c.bf16 %v286, %v283
    %v332 = vpack.c.bf16 %v294, %v291
    %v333 = vpack.c.bf16 %v302, %v299
    %v334 = vpack.c.bf16 %v310, %v307
    %v335 = vpack.c.bf16 %v318, %v315
    %v336 = vpack.c.bf16 %v326, %v323
    %v345 = vunpack.c.l.b16 %v329
    %v346 = vunpack.c.h.b16 %v329
    %v347 = vunpack.c.l.b16 %v330
    %v348 = vunpack.c.h.b16 %v330
    %v349 = vunpack.c.l.b16 %v331
    %v350 = vunpack.c.h.b16 %v331
    %v351 = vunpack.c.l.b16 %v332
    %v352 = vunpack.c.h.b16 %v332
    %v353 = vunpack.c.l.b16 %v333
    %v354 = vunpack.c.h.b16 %v333
    %v355 = vunpack.c.l.b16 %v334
    %v356 = vunpack.c.h.b16 %v334
    %v357 = vunpack.c.l.b16 %v335
    %v358 = vunpack.c.h.b16 %v335
    %v359 = vunpack.c.l.b16 %v336
    %v360 = vunpack.c.h.b16 %v336
    %v361 = vpack.c.b16 %v345, %v345
    %v362 = vpack.c.b16 %v346, %v346
    %v363 = vpack.c.b16 %v347, %v347
    %v364 = vpack.c.b16 %v348, %v348
    %v365 = vpack.c.b16 %v349, %v349
    %v366 = vpack.c.b16 %v350, %v350
    %v367 = vpack.c.b16 %v351, %v351
    %v368 = vpack.c.b16 %v352, %v352
    %v369 = vpack.c.b16 %v353, %v353
    %v370 = vpack.c.b16 %v354, %v354
    %v371 = vpack.c.b16 %v355, %v355
    %v372 = vpack.c.b16 %v356, %v356
    %v373 = vpack.c.b16 %v357, %v357
    %v374 = vpack.c.b16 %v358, %v358
    %v375 = vpack.c.b16 %v359, %v359
    %v376 = vpack.c.b16 %v360, %v360
    %393 = vst [vmem:[#allocation2] sm:$0xf] %v361
    %394 = vst [vmem:[#allocation2 + $0x4] sm:$0xf] %v362
    %395 = vst [vmem:[#allocation2 + $0x8] sm:$0xf] %v363
    %396 = vst [vmem:[#allocation2 + $0xc] sm:$0xf] %v364
    %397 = vst [vmem:[#allocation2 + $0x10] sm:$0xf] %v365
    %398 = vst [vmem:[#allocation2 + $0x14] sm:$0xf] %v366
    %399 = vst [vmem:[#allocation2 + $0x18] sm:$0xf] %v367
    %400 = vst [vmem:[#allocation2 + $0x1c] sm:$0xf] %v368
    %401 = vst [vmem:[#allocation2 + $0x20] sm:$0xf] %v369
    %402 = vst [vmem:[#allocation2 + $0x24] sm:$0xf] %v370
    %403 = vst [vmem:[#allocation2 + $0x28] sm:$0xf] %v371
    %404 = vst [vmem:[#allocation2 + $0x2c] sm:$0xf] %v372
    %405 = vst [vmem:[#allocation2 + $0x30] sm:$0xf] %v373
    %406 = vst [vmem:[#allocation2 + $0x34] sm:$0xf] %v374
    %407 = vst [vmem:[#allocation2 + $0x38] sm:$0xf] %v375
    %408 = vst [vmem:[#allocation2 + $0x3c] sm:$0xf] %v376
    // Predicated region
    $region14: #{tpu_custom_call.1} parent=1 // pred_check
      _
    $region15: #{tpu_custom_call.1} parent=1 // pred_check_branch
      %410 = sbr.rel (0) target = $region17
    $region16: #{tpu_custom_call.1} parent=1 // pred_region
      %s412 = ssub.s32 1024, 1024
      %413 = vsyncadd [#allocation3], %s412
      %s414 = sshll.u32 [#allocation2], 4
      %s415 = int_to_ptr.vmem [resolvable:$true] %s414
      %420 = dma.vmem_to_hbm [thread:$0]  %s415, 1024, %s3, [#allocation3], 64, 64, 4
    $region17: #{tpu_custom_call.1} parent=1 // pred_fallthru
      _
    // Predicated region
    $region18: #{tpu_custom_call.1} parent=1 // pred_check
      _
    $region19: #{tpu_custom_call.1} parent=1 // pred_check_branch
      %422 = sbr.rel (0) target = $region21
    $region20: #{tpu_custom_call.1} parent=1 // pred_region
      %423 = dma.done [#allocation3], 1024
    $region21: #{tpu_custom_call.1} parent=1 // pred_fallthru
      _
    %424 = vsyncpa [#allocation3], 1

</llo_original>
